<compile_context>
chip_gen: v7x
topology: tpu7x:2x2x1
jax: 0.10.0
libtpu: 0.0.40
codegen_flags: <defaults>
</compile_context>

<pallas_src>
import math

import jax
import jax.numpy as jnp
from jax.experimental import pallas as pl
from jax.experimental.pallas import tpu as pltpu


def _round_up(a: int, b: int) -> int:
    return ((a + b - 1) // b) * b


def _linear_small_kernel(x_ref, w_ref, b_ref, o_ref):
    # x_ref: (M, K), w_ref: (N, K)  [PyTorch layout], b_ref: (1, N), o_ref: (M, N)
    # Contract the last dim of both operands -> x @ W^T with no transpose op.
    o_ref[...] = (
        jax.lax.dot_general(
            x_ref[...],
            w_ref[...],
            dimension_numbers=(((1,), (1,)), ((), ())),
            preferred_element_type=jnp.float32,
        )
        + b_ref[...].astype(jnp.float32)
    ).astype(o_ref.dtype)


def _linear_tiled_kernel(x_ref, w_ref, b_ref, o_ref, acc_ref):
    # x_ref: (tm, tk), w_ref: (tn, tk), b_ref: (1, tn), o_ref: (tm, tn)
    k = pl.program_id(2)

    @pl.when(k == 0)
    def _():
        acc_ref[...] = jnp.zeros_like(acc_ref)

    # MXU matmul with f32 accumulation; weight consumed in (N, K) layout directly.
    acc_ref[...] += jax.lax.dot_general(
        x_ref[...],
        w_ref[...],
        dimension_numbers=(((1,), (1,)), ((), ())),
        preferred_element_type=jnp.float32,
    )

    @pl.when(k == pl.num_programs(2) - 1)
    def _():
        # Bias add in f32, single cast, single lane-dense writeback per (i, j).
        o_ref[...] = (acc_ref[...] + b_ref[...].astype(jnp.float32)).astype(
            o_ref.dtype
        )


def linear_pallas(x, weight, bias, *, tm=512, tn=512, tk=512,
                  small_path_max_bytes=4 * 1024 * 1024):
    """nn.Linear forward: y = x @ weight.T + bias.

    `weight` is (N, K) (PyTorch layout) and is never transposed/copied here.
    Supports arbitrary leading batch dims on x (flattened to M).
    """
    orig_shape = x.shape
    K = orig_shape[-1]
    x2 = x.reshape(-1, K)
    M = x2.shape[0]
    N, K2 = weight.shape
    assert K == K2, f"feature mismatch: x has {K}, weight has {K2}"
    b2 = bias.reshape(1, N)

    itemsize = jnp.dtype(x.dtype).itemsize

    # ---------------- small-problem fast path (no pad, single VMEM tile) -------
    total_bytes = (M * K + N * K + M * N + N) * max(itemsize, 4)
    if total_bytes <= small_path_max_bytes:
        out = pl.pallas_call(
            _linear_small_kernel,
            out_shape=jax.ShapeDtypeStruct((M, N), x.dtype),
        )(x2, weight, b2)
        return out.reshape(*orig_shape[:-1], N)

    # ---------------- tiled path for large shapes ------------------------------
    # Sublane multiple depends on dtype packing (f32:8, bf16:16, int8:32).
    sub = max(8, 32 // itemsize)
    tm_e = min(tm, _round_up(M, sub))
    tn_e = min(tn, _round_up(N, 128))
    tk_e = min(tk, _round_up(K, 128))

    # v7x megacore occupancy: if M is a single tile, make sure N has >= 2 tiles.
    if _round_up(M, tm_e) == tm_e:
        n_pad = _round_up(N, 128)
        if n_pad // tn_e < 2 and n_pad >= 256:
            tn_e = _round_up(n_pad // 2, 128)

    Mp = _round_up(M, tm_e)
    Np = _round_up(N, tn_e)
    Kp = _round_up(K, tk_e)

    # Zero-padding K contributes nothing to the contraction; padded output
    # columns/rows are sliced off below.
    xp = x2 if (Mp == M and Kp == K) else jnp.pad(x2, ((0, Mp - M), (0, Kp - K)))
    wp = (weight if (Np == N and Kp == K)
          else jnp.pad(weight, ((0, Np - N), (0, Kp - K))))
    bp = b2 if Np == N else jnp.pad(b2, ((0, 0), (0, Np - N)))

    grid = (Mp // tm_e, Np // tn_e, Kp // tk_e)

    # Double-buffered x/w/bias/out tiles + f32 accumulator; clamp to 48 MiB so
    # the same code is safe on v7x's 64 MiB per-TC VMEM.
    vmem_bytes = (
        2 * (tm_e * tk_e + tn_e * tk_e + tn_e) * itemsize
        + 2 * tm_e * tn_e * itemsize
        + tm_e * tn_e * 4
    )
    vmem_limit = int(min(48 * 1024 * 1024, max(32 * 1024 * 1024, 2 * vmem_bytes)))

    out = pl.pallas_call(
        _linear_tiled_kernel,
        out_shape=jax.ShapeDtypeStruct((Mp, Np), x.dtype),
        grid=grid,
        in_specs=[
            pl.BlockSpec((tm_e, tk_e), lambda i, j, k: (i, k)),
            pl.BlockSpec((tn_e, tk_e), lambda i, j, k: (j, k)),
            pl.BlockSpec((1, tn_e), lambda i, j, k: (0, j)),
        ],
        out_specs=pl.BlockSpec((tm_e, tn_e), lambda i, j, k: (i, j)),
        scratch_shapes=[pltpu.VMEM((tm_e, tn_e), jnp.float32)],
        compiler_params=pltpu.CompilerParams(
            dimension_semantics=("parallel", "parallel", "arbitrary"),
            vmem_limit_bytes=vmem_limit,
        ),
    )(xp, wp, bp)

    out = out[:M, :N]
    return out.reshape(*orig_shape[:-1], N)


if __name__ == "__main__":
    # Shapes consistent with SimpleNN usage: batch=8, input_size=32, output_size=16.
    batch, input_size, output_size = 8, 32, 16

    key = jax.random.PRNGKey(0)
    kx, kw, kb = jax.random.split(key, 3)

    x = jax.random.normal(kx, (batch, input_size), dtype=jnp.float32)

    # Deterministic nn.Linear-style init: U(-1/sqrt(K), 1/sqrt(K)).
    bound = 1.0 / math.sqrt(input_size)
    weight = jax.random.uniform(
        kw, (output_size, input_size), dtype=jnp.float32, minval=-bound, maxval=bound
    )
    bias = jax.random.uniform(
        kb, (output_size,), dtype=jnp.float32, minval=-bound, maxval=bound
    )

    # --- main check: small fast path (the actual SimpleNN shape) ---------------
    out = linear_pallas(x, weight, bias)
    jax.block_until_ready(out)
    ref = x @ weight.T + bias
    assert out.shape == (batch, output_size)
    assert jnp.allclose(out, ref, atol=1e-5, rtol=1e-5)

    # --- secondary smoke test: exercise the tiled path once --------------------
    M2, K2, N2 = 256, 640, 384
    k2x, k2w, k2b = jax.random.split(jax.random.PRNGKey(1), 3)
    x_big = jax.random.normal(k2x, (M2, K2), dtype=jnp.float32)
    w_big = jax.random.normal(k2w, (N2, K2), dtype=jnp.float32) * 0.02
    b_big = jax.random.normal(k2b, (N2,), dtype=jnp.float32)
    out_big = linear_pallas(x_big, w_big, b_big, small_path_max_bytes=0)
    jax.block_until_ready(out_big)
    ref_big = x_big @ w_big.T + b_big
    assert out_big.shape == (M2, N2)
    assert jnp.allclose(out_big, ref_big, atol=1e-2, rtol=1e-2)

    print("KERNEL_OK")
</pallas_src>

<mosaic_0001>
module attributes {stable_mosaic.version = 11 : i64} {
  func.func @_linear_small_kernel(%arg0: memref<8x32xf32, #tpu.memory_space<vmem>>, %arg1: memref<16x32xf32, #tpu.memory_space<vmem>>, %arg2: memref<1x16xf32, #tpu.memory_space<vmem>>, %arg3: memref<8x16xf32, #tpu.memory_space<vmem>>) attributes {dimension_semantics = [], scalar_prefetch = 0 : i64, scratch_operands = 0 : i64, tpu.core_type = #tpu.core_type<tc>} {
    %c0 = arith.constant 0 : index
    %c0_0 = arith.constant 0 : index
    %0 = vector.load %arg0[%c0, %c0_0] : memref<8x32xf32, #tpu.memory_space<vmem>>, vector<8x32xf32>
    %c0_1 = arith.constant 0 : index
    %c0_2 = arith.constant 0 : index
    %1 = vector.load %arg1[%c0_1, %c0_2] : memref<16x32xf32, #tpu.memory_space<vmem>>, vector<16x32xf32>
    %cst = arith.constant dense<0.000000e+00> : vector<8x16xf32>
    %2 = tpu.matmul %0, %1, %cst {dimension_numbers = #tpu.dot_dimension_numbers<[1], [1], [0], [0], [0, 0, 1, 0], [], []>} : vector<8x32xf32>, vector<16x32xf32>, vector<8x16xf32> -> vector<8x16xf32>
    %c0_3 = arith.constant 0 : index
    %c0_4 = arith.constant 0 : index
    %3 = vector.load %arg2[%c0_3, %c0_4] : memref<1x16xf32, #tpu.memory_space<vmem>>, vector<1x16xf32>
    %4 = vector.broadcast %3 : vector<1x16xf32> to vector<8x16xf32>
    %5 = arith.addf %2, %4 : vector<8x16xf32>
    %c0_5 = arith.constant 0 : index
    %c0_6 = arith.constant 0 : index
    %6 = vector.load %arg3[%c0_5, %c0_6] : memref<8x16xf32, #tpu.memory_space<vmem>>, vector<8x16xf32>
    tpu.vector_store %arg3[%c0_5, %c0_6], %5 {strides = array<i32>} : memref<8x16xf32, #tpu.memory_space<vmem>>, vector<8x16xf32>,
    return
  }
}

</mosaic_0001>

<llo_original>
// kernel: tpu_custom_call.1
$region0: #{tpu_custom_call.1}
  #allocation0 [shape = 'u32[]', space=smem, size = 0x4, offset = 0x4, fixed_abs, tag = 'smem constant byte address 0x4 - core index']
  #allocation1 [shape = 'u32[144,128]{1,0:T(1,128)}', space=vmem, size = 0x12000, scoped, tag = 'internal scratch']
  %s0 = inlined_call_operand.hbm [shape: f32[8,32], index: 0, kind: input, shape index: {}]
  %s1 = inlined_call_operand.hbm [shape: f32[16,32], index: 1, kind: input, shape index: {}]
  %s2 = inlined_call_operand.vmem [shape: f32[1,16], index: 2, kind: input, shape index: {}]
  %s3 = inlined_call_operand.hbm [shape: f32[8,16], index: 3, kind: output, shape index: {}]
  %s4 = sld [smem:[#allocation0]]
  $region30: #{tpu_custom_call.1} parent=0
    _
  %s6 = ssub.s32 1, %s4
  %s7 = scalar_select 0, %s6, %s4
  $region1: #{tpu_custom_call.1} parent=0
    #allocation2 [shape = 'u8[4096]{0}', space=vmem, size = 0x1000, scoped, tag = 'input window, operand 0, single buffered']
    #allocation3 [shape = 's32[1]{0}', space=sflag, size = 0x4, scoped, tag = 'scoped memory for tpu_custom_call.1']
    #allocation4 [shape = 's32[1]{0}', space=sflag, size = 0x4, scoped, tag = 'scoped memory for tpu_custom_call.1']
    #allocation5 [shape = 'u8[8192]{0}', space=vmem, size = 0x2000, scoped, tag = 'input window, operand 1, single buffered']
    #allocation6 [shape = 's32[1]{0}', space=sflag, size = 0x4, scoped, tag = 'scoped memory for tpu_custom_call.1']
    #allocation7 [shape = 'u8[4096]{0}', space=vmem, size = 0x1000, scoped, tag = 'output window, operand 0, single buffered']
    %8 = vsyncpa [#allocation3], 0
    %9 = vsyncpa [#allocation6], 0
    %10 = vsyncpa [#allocation4], 0
    // Predicated region
    $region2: #{tpu_custom_call.1} parent=1 // pred_check
      _
    $region3: #{tpu_custom_call.1} parent=1 // pred_check_branch
      %12 = sbr.rel (0) target = $region5
    $region4: #{tpu_custom_call.1} parent=1 // pred_region
      %s14 = ssub.s32 128, 128
      %15 = vsyncadd [#allocation3], %s14
      %s17 = sshll.u32 [#allocation2], 4
      %s18 = int_to_ptr.vmem [resolvable:$true] %s17
      %20 = dma.hbm_to_vmem [thread:$0]  %s0, 128, %s18, [#allocation3]
    $region5: #{tpu_custom_call.1} parent=1 // pred_fallthru
      _
    // Predicated region
    $region6: #{tpu_custom_call.1} parent=1 // pred_check
      _
    $region7: #{tpu_custom_call.1} parent=1 // pred_check_branch
      %22 = sbr.rel (0) target = $region9
    $region8: #{tpu_custom_call.1} parent=1 // pred_region
      %s24 = ssub.s32 256, 256
      %25 = vsyncadd [#allocation6], %s24
      %s26 = sshll.u32 [#allocation5], 4
      %s27 = int_to_ptr.vmem [resolvable:$true] %s26
      %32 = dma.hbm_to_vmem [thread:$0]  %s1, 256, %s27, [#allocation6], 128, 128, 8
    $region9: #{tpu_custom_call.1} parent=1 // pred_fallthru
      _
    // Predicated region
    $region10: #{tpu_custom_call.1} parent=1 // pred_check
      _
    $region11: #{tpu_custom_call.1} parent=1 // pred_check_branch
      %34 = sbr.rel (0) target = $region13
    $region12: #{tpu_custom_call.1} parent=1 // pred_region
      _
    $region13: #{tpu_custom_call.1} parent=1 // pred_fallthru
      _
    // Predicated region
    $region14: #{tpu_custom_call.1} parent=1 // pred_check
      _
    $region15: #{tpu_custom_call.1} parent=1 // pred_check_branch
      %36 = sbr.rel (0) target = $region17
    $region16: #{tpu_custom_call.1} parent=1 // pred_region
      %37 = dma.done [#allocation3], 128
    $region17: #{tpu_custom_call.1} parent=1 // pred_fallthru
      _
    // Predicated region
    $region18: #{tpu_custom_call.1} parent=1 // pred_check
      _
    $region19: #{tpu_custom_call.1} parent=1 // pred_check_branch
      %39 = sbr.rel (0) target = $region21
    $region20: #{tpu_custom_call.1} parent=1 // pred_region
      %40 = dma.done [#allocation6], 256
    $region21: #{tpu_custom_call.1} parent=1 // pred_fallthru
      _
    %v41 = vld [vmem:[#allocation2] sm:$0xff]
    %v42 = vld [vmem:[#allocation5] sm:$0xff]
    %v43 = vld [vmem:[#allocation5 + $0x8] sm:$0xff]
    %v44 = vld [vmem:[%s2] sm:$0x1]
    %v46 = vlaneseq
    %v47 = vshrl.u32 %v46, 7
    %v48 = vsub.s32 0, %v47
    %v49 = vrot.slane %v44, %v48
    %vm51 = vcmask 261120
    %v53 = vsel %vm51, %v41, 0
    %v56 = vsel %vm51, %v42, 0
    %v59 = vsel %vm51, %v43, 0
    %61 = vmatprep.subr.mxu0 0.0
    %62 = vmatpush1.xpose.msra.mxu0 %v56
    %63 = vmatprep.subr.mxu0 0.0
    %64 = vmatpush1.xpose.msra.mxu0 %v59
    %65 = vmatprep.subr.mxu0 0.0
    %66 = vmatpush1.xpose.msra.mxu0 0.0
    %67 = vmatprep.subr.mxu0 0.0
    %68 = vmatpush1.xpose.msra.mxu0 0.0
    %69 = vmatprep.subr.mxu0 0.0
    %70 = vmatpush1.xpose.msra.mxu0 0.0
    %71 = vmatprep.subr.mxu0 0.0
    %72 = vmatpush1.xpose.msra.mxu0 0.0
    %73 = vmatprep.subr.mxu0 0.0
    %74 = vmatpush1.xpose.msra.mxu0 0.0
    %75 = vmatprep.subr.mxu0 0.0
    %76 = vmatpush1.xpose.msra.mxu0 0.0
    %77 = vmatprep.subr.mxu0 0.0
    %78 = vmatpush1.xpose.msra.mxu0 0.0
    %79 = vmatprep.subr.mxu0 0.0
    %80 = vmatpush1.xpose.msra.mxu0 0.0
    %81 = vmatprep.subr.mxu0 0.0
    %82 = vmatpush1.xpose.msra.mxu0 0.0
    %83 = vmatprep.subr.mxu0 0.0
    %84 = vmatpush1.xpose.msra.mxu0 0.0
    %85 = vmatprep.subr.mxu0 0.0
    %86 = vmatpush1.xpose.msra.mxu0 0.0
    %87 = vmatprep.subr.mxu0 0.0
    %88 = vmatpush1.xpose.msra.mxu0 0.0
    %89 = vmatprep.subr.mxu0 0.0
    %90 = vmatpush1.xpose.msra.mxu0 0.0
    %91 = vmatprep.subr.mxu0 0.0
    %92 = vmatpush1.xpose.msra.mxu0 0.0
    %93 = vmatprep.subr.mxu0 0.0
    %94 = vmatpush1.xpose.msra.mxu0 0.0
    %95 = vmatprep.subr.mxu0 0.0
    %96 = vmatpush1.xpose.msra.mxu0 0.0
    %97 = vmatprep.subr.mxu0 0.0
    %98 = vmatpush1.xpose.msra.mxu0 0.0
    %99 = vmatprep.subr.mxu0 0.0
    %100 = vmatpush1.xpose.msra.mxu0 0.0
    %101 = vmatprep.subr.mxu0 0.0
    %102 = vmatpush1.xpose.msra.mxu0 0.0
    %103 = vmatprep.subr.mxu0 0.0
    %104 = vmatpush1.xpose.msra.mxu0 0.0
    %105 = vmatprep.subr.mxu0 0.0
    %106 = vmatpush1.xpose.msra.mxu0 0.0
    %107 = vmatprep.subr.mxu0 0.0
    %108 = vmatpush1.xpose.msra.mxu0 0.0
    %109 = vmatprep.subr.mxu0 0.0
    %110 = vmatpush1.xpose.msra.mxu0 0.0
    %111 = vmatprep.subr.mxu0 0.0
    %112 = vmatpush1.xpose.msra.mxu0 0.0
    %113 = vmatprep.subr.mxu0 0.0
    %114 = vmatpush1.xpose.msra.mxu0 0.0
    %115 = vmatprep.subr.mxu0 0.0
    %116 = vmatpush1.xpose.msra.mxu0 0.0
    %117 = vmatprep.subr.mxu0 0.0
    %118 = vmatpush1.xpose.msra.mxu0 0.0
    %119 = vmatprep.subr.mxu0 0.0
    %120 = vmatpush1.xpose.msra.mxu0 0.0
    %121 = vmatprep.subr.mxu0 0.0
    %122 = vmatpush1.xpose.msra.mxu0 0.0
    %123 = vmatprep.subr.mxu0 0.0
    %124 = vmatpush1.xpose.msra.mxu0 0.0
    %125 = vmatprep.mubr.f32.mxu0 0.0
    %126 = vmatmul.mubr.f32.gmra.mrb[0].mxu0 %v53
    %v127 = vpop.f32.mrb[0].mxu0
    %v128 = vadd.f32 %v49, %v127
    %v129 = vpop.f32.mrb[0].mxu0
    %130 = vdwg.mxu0
    %vm131 = vcmask 130048
    %132 = vst.msk [vmem:[#allocation7] sm:$0xff] %vm131, %v128
    // Predicated region
    $region22: #{tpu_custom_call.1} parent=1 // pred_check
      _
    $region23: #{tpu_custom_call.1} parent=1 // pred_check_branch
      %134 = sbr.rel (0) target = $region25
    $region24: #{tpu_custom_call.1} parent=1 // pred_region
      %s136 = ssub.s32 128, 128
      %137 = vsyncadd [#allocation4], %s136
      %s139 = sshll.u32 [#allocation7], 4
      %s140 = int_to_ptr.vmem [resolvable:$true] %s139
      %142 = dma.vmem_to_hbm [thread:$0]  %s140, 128, %s3, [#allocation4]
    $region25: #{tpu_custom_call.1} parent=1 // pred_fallthru
      _
    // Predicated region
    $region26: #{tpu_custom_call.1} parent=1 // pred_check
      _
    $region27: #{tpu_custom_call.1} parent=1 // pred_check_branch
      %144 = sbr.rel (0) target = $region29
    $region28: #{tpu_custom_call.1} parent=1 // pred_region
      %145 = dma.done [#allocation4], 128
    $region29: #{tpu_custom_call.1} parent=1 // pred_fallthru
      _
    %146 = vsyncpa [#allocation3], 1
    %147 = vsyncpa [#allocation6], 1
    %148 = vsyncpa [#allocation4], 1

</llo_original>
